<compile_context>
chip_gen: v7x
topology: tpu7x:2x2x1
jax: 0.10.0
libtpu: 0.0.40
codegen_flags: <defaults>
</compile_context>

<pallas_src>
import jax
import jax.numpy as jnp
from jax.experimental import pallas as pl
from jax.experimental.pallas import tpu as pltpu


def _ceil_div(a, b):
    return -(-a // b)


def _round_up(a, m):
    return _ceil_div(a, m) * m


def _policy_head(x_s, x_g, w1s_ref, w1g_ref, b1_ref, w2_ref, b2_ref):
    """relu([x_s | x_g] @ W1 + b1) @ W2 + b2 with the concat expressed as two
    dots against the pre-split halves of W1 (no in-kernel concat or slice)."""
    h = (jnp.dot(x_s, w1s_ref[...], preferred_element_type=jnp.float32)
         + jnp.dot(x_g, w1g_ref[...], preferred_element_type=jnp.float32)
         + b1_ref[...])
    h = jnp.maximum(h, 0.0)
    return jnp.dot(h, w2_ref[...], preferred_element_type=jnp.float32) + b2_ref[...]


def _finalize(q_a, q_e, a_idx, out_ref):
    """gather(q_a, a) and max(q_e, -1) -> one narrow (tile_b, 2) store."""
    b, n_act = q_a.shape
    col = jax.lax.broadcasted_iota(jnp.int32, (b, n_act), 1)
    onehot = col == a_idx                                                  # [b, A]
    q_pred = jnp.sum(jnp.where(onehot, q_a, 0.0), axis=-1, keepdims=True)  # [b, 1]
    q_next = jnp.max(q_e, axis=-1, keepdims=True)                          # [b, 1]
    lane = jax.lax.broadcasted_iota(jnp.int32, out_ref.shape, 1)           # [b, 2]
    out_ref[...] = jnp.where(lane == 0, q_pred, q_next)


def ddqn_shared_kernel(s_ref, sp_ref, g_ref, a_ref,
                       w1s_ref, w1g_ref, b1_ref, w2_ref, b2_ref,
                       out_ref):
    # q_action and q_eval share the same parameters (DDQN right after init):
    # run the head twice on the resident weights -- no sublane concat.
    g = g_ref[...]
    q_a = _policy_head(s_ref[...], g, w1s_ref, w1g_ref, b1_ref, w2_ref, b2_ref)
    q_e = _policy_head(sp_ref[...], g, w1s_ref, w1g_ref, b1_ref, w2_ref, b2_ref)
    _finalize(q_a, q_e, a_ref[...], out_ref)


def ddqn_general_kernel(s_ref, sp_ref, g_ref, a_ref,
                        w1s_a, w1g_a, b1_a, w2_a, b2_a,
                        w1s_e, w1g_e, b1_e, w2_e, b2_e,
                        out_ref):
    # Distinct q_action / q_eval parameters (after soft updates).
    g = g_ref[...]
    q_a = _policy_head(s_ref[...], g, w1s_a, w1g_a, b1_a, w2_a, b2_a)
    q_e = _policy_head(sp_ref[...], g, w1s_e, w1g_e, b1_e, w2_e, b2_e)
    _finalize(q_a, q_e, a_ref[...], out_ref)


def ddqn_forward(s, a, s_prime, goal, params_action, params_eval):
    """Pallas implementation of DDQN.forward.

    s, s_prime: [B, obs_dim] float32
    a:          [B, 1] (or [B]) integer action indices
    goal:       [B, goal_dim] float32
    params_*:   (w1 [obs+goal, H], b1 [H] or [1,H], w2 [H, A], b2 [A] or [1,A])
    Returns (q_pred [B, 1], q_next [B, 1]) float32.
    """
    s = s.astype(jnp.float32)
    s_prime = s_prime.astype(jnp.float32)
    goal = goal.astype(jnp.float32)
    B, obs_dim = s.shape
    goal_dim = goal.shape[1]
    hidden = params_action[2].shape[0]
    n_act = params_action[2].shape[1]
    a = a.astype(jnp.int32).reshape(B, 1)

    # --- batch tiling --------------------------------------------------------
    # Single tile for small/medium batches (per-grid-step overhead dominates
    # this tiny kernel); for B >= 1024 split into >= 2 tiles so both v7x
    # TensorCores get work while each tile stays >= 512 rows.  VMEM per tile is
    # well under 3 MB even at 2048 rows, so this fits every generation.
    if B < 1024:
        n_tiles, tile_b = 1, B
    else:
        n_tiles = max(2, _ceil_div(B, 2048))
        tile_b = _round_up(_ceil_div(B, n_tiles), 8)
    B_pad = tile_b * n_tiles
    if B_pad != B:
        pad = ((0, B_pad - B), (0, 0))
        s, s_prime, goal, a = tuple(jnp.pad(t, pad) for t in (s, s_prime, goal, a))
    grid = (n_tiles,)

    def split_head(p):
        w1, b1, w2, b2 = p
        # Pre-split W1 at trace time so the kernel never slices across a
        # sublane-tile boundary; reshape biases to (1, N) rows.
        return (w1[:obs_dim, :].astype(jnp.float32),
                w1[obs_dim:, :].astype(jnp.float32),
                b1.reshape(1, hidden).astype(jnp.float32),
                w2.astype(jnp.float32),
                b2.reshape(1, n_act).astype(jnp.float32))

    # Shared-weight fast path selected by object identity (the q_eval-loaded-
    # from-q_action-state_dict case); functionally-equal-but-distinct trees
    # take the general path (correct, just re-DMAs a few KB of weights).
    shared = (len(params_action) == len(params_eval)
              and all(pa is pe for pa, pe in zip(params_action, params_eval)))

    if shared:
        kernel = ddqn_shared_kernel
        weights = split_head(params_action)
    else:
        kernel = ddqn_general_kernel
        weights = split_head(params_action) + split_head(params_eval)

    def data_spec(arr):
        return pl.BlockSpec((tile_b, arr.shape[1]), lambda i: (i, 0),
                            memory_space=pltpu.MemorySpace.VMEM)

    def weight_spec(arr):
        # Constant index_map -> Pallas detects the unchanged block index and
        # does not re-DMA these per grid step; they stay VMEM-resident.
        return pl.BlockSpec(arr.shape, lambda i: (0, 0),
                            memory_space=pltpu.MemorySpace.VMEM)

    data_in = (s, s_prime, goal, a)
    in_specs = ([data_spec(t) for t in data_in]
                + [weight_spec(t) for t in weights])

    flops = int(4 * B_pad * ((obs_dim + goal_dim) * hidden + hidden * n_act))
    bytes_accessed = int(sum(t.size * t.dtype.itemsize for t in data_in)
                         + sum(t.size * t.dtype.itemsize for t in weights)
                         + B_pad * 2 * 4)

    out = pl.pallas_call(
        kernel,
        out_shape=jax.ShapeDtypeStruct((B_pad, 2), jnp.float32),
        grid=grid,
        in_specs=in_specs,
        out_specs=pl.BlockSpec((tile_b, 2), lambda i: (i, 0),
                               memory_space=pltpu.MemorySpace.VMEM),
        compiler_params=pltpu.CompilerParams(
            dimension_semantics=("parallel",)),
        cost_estimate=pl.CostEstimate(flops=flops, transcendentals=0,
                                      bytes_accessed=bytes_accessed),
    )(*data_in, *weights)

    out = out[:B]
    return out[:, 0:1], out[:, 1:2]


def init_policy_params(key, in_dim, hidden, out_dim):
    """Deterministic init mimicking nn.Linear (uniform +-1/sqrt(fan_in))."""
    k1, k2, k3, k4 = jax.random.split(key, 4)
    lim1 = 1.0 / jnp.sqrt(in_dim)
    lim2 = 1.0 / jnp.sqrt(hidden)
    w1 = jax.random.uniform(k1, (in_dim, hidden), jnp.float32, -lim1, lim1)
    b1 = jax.random.uniform(k2, (1, hidden), jnp.float32, -lim1, lim1)
    w2 = jax.random.uniform(k3, (hidden, out_dim), jnp.float32, -lim2, lim2)
    b2 = jax.random.uniform(k4, (1, out_dim), jnp.float32, -lim2, lim2)
    return (w1, b1, w2, b2)


# TODO(synk): train_net / Adam optimizer / soft_update are training-side and
# are not part of the forward pass; not implemented here.

if __name__ == "__main__":
    obs_dim, goal_dim, action_dim, hidden_units = 12, 4, 8, 32

    key = jax.random.PRNGKey(0)
    kp, kpe, kdata = jax.random.split(key, 3)
    params_action = init_policy_params(kp, obs_dim + goal_dim,
                                       hidden_units, action_dim)
    params_eval = init_policy_params(kpe, obs_dim + goal_dim,
                                     hidden_units, action_dim)

    def reference(s, a, s_prime, goal, pa, pe):
        w1a, b1a, w2a, b2a = pa
        w1e, b1e, w2e, b2e = pe
        x = jnp.concatenate([s, goal], axis=1)
        xp = jnp.concatenate([s_prime, goal], axis=1)
        qa = jnp.maximum(x @ w1a + b1a, 0.0) @ w2a + b2a
        qe = jnp.maximum(xp @ w1e + b1e, 0.0) @ w2e + b2e
        return (jnp.take_along_axis(qa, a, axis=-1),
                jnp.max(qe, axis=-1, keepdims=True))

    def check(B, pa, pe, tag):
        ks, ksp, kg, ka = jax.random.split(jax.random.fold_in(kdata, B), 4)
        s = jax.random.normal(ks, (B, obs_dim), jnp.float32)
        s_prime = jax.random.normal(ksp, (B, obs_dim), jnp.float32)
        goal = jax.random.normal(kg, (B, goal_dim), jnp.float32)
        a = jax.random.randint(ka, (B, 1), 0, action_dim, jnp.int32)
        q_pred, q_next = ddqn_forward(s, a, s_prime, goal, pa, pe)
        jax.block_until_ready((q_pred, q_next))
        qp_ref, qn_ref = reference(s, a, s_prime, goal, pa, pe)
        assert q_pred.shape == (B, 1) and q_next.shape == (B, 1), tag
        assert jnp.allclose(q_pred, qp_ref, atol=1e-4), f"q_pred mismatch ({tag})"
        assert jnp.allclose(q_next, qn_ref, atol=1e-4), f"q_next mismatch ({tag})"

    # 1) q_eval initialized from q_action's state_dict -> shared-weight kernel.
    check(4, params_action, params_action, "shared/small")
    # 2) Distinct target weights (post soft-update regime) -> general kernel.
    check(4, params_action, params_eval, "general/small")
    # 3) Replay-sized, non-divisible batch -> padded 2-tile parallel grid.
    check(1100, params_action, params_eval, "general/tiled")

    print("KERNEL_OK")
</pallas_src>

<mosaic_0001>
module attributes {stable_mosaic.version = 11 : i64} {
  func.func @ddqn_shared_kernel(%arg0: i32, %arg1: memref<4x12xf32, #tpu.memory_space<vmem>>, %arg2: memref<4x12xf32, #tpu.memory_space<vmem>>, %arg3: memref<4x4xf32, #tpu.memory_space<vmem>>, %arg4: memref<4x1xi32, #tpu.memory_space<vmem>>, %arg5: memref<12x32xf32, #tpu.memory_space<vmem>>, %arg6: memref<4x32xf32, #tpu.memory_space<vmem>>, %arg7: memref<1x32xf32, #tpu.memory_space<vmem>>, %arg8: memref<32x8xf32, #tpu.memory_space<vmem>>, %arg9: memref<1x8xf32, #tpu.memory_space<vmem>>, %arg10: memref<4x2xf32, #tpu.memory_space<vmem>>) attributes {dimension_semantics = [#tpu.dimension_semantics<parallel>], iteration_bounds = array<i64: 1>, scalar_prefetch = 0 : i64, scratch_operands = 0 : i64, tpu.core_type = #tpu.core_type<tc>, window_params = [{transform_indices = @transform_0, window_bounds = array<i64: 4, 12>}, {transform_indices = @transform_1, window_bounds = array<i64: 4, 12>}, {transform_indices = @transform_2, window_bounds = array<i64: 4, 4>}, {transform_indices = @transform_3, window_bounds = array<i64: 4, 1>}, {pipeline_mode = #tpu.pipeline_mode<synchronous>, transform_indices = @transform_4, window_bounds = array<i64: 12, 32>}, {pipeline_mode = #tpu.pipeline_mode<synchronous>, transform_indices = @transform_5, window_bounds = array<i64: 4, 32>}, {pipeline_mode = #tpu.pipeline_mode<synchronous>, transform_indices = @transform_6, window_bounds = array<i64: 1, 32>}, {pipeline_mode = #tpu.pipeline_mode<synchronous>, transform_indices = @transform_7, window_bounds = array<i64: 32, 8>}, {pipeline_mode = #tpu.pipeline_mode<synchronous>, transform_indices = @transform_8, window_bounds = array<i64: 1, 8>}, {transform_indices = @transform_9, window_bounds = array<i64: 4, 2>}]} {
    %c0 = arith.constant 0 : index
    %c0_0 = arith.constant 0 : index
    %0 = vector.load %arg3[%c0, %c0_0] : memref<4x4xf32, #tpu.memory_space<vmem>>, vector<4x4xf32>
    %c0_1 = arith.constant 0 : index
    %c0_2 = arith.constant 0 : index
    %1 = vector.load %arg1[%c0_1, %c0_2] : memref<4x12xf32, #tpu.memory_space<vmem>>, vector<4x12xf32>
    %c0_3 = arith.constant 0 : index
    %c0_4 = arith.constant 0 : index
    %2 = vector.load %arg5[%c0_3, %c0_4] : memref<12x32xf32, #tpu.memory_space<vmem>>, vector<12x32xf32>
    %cst = arith.constant dense<0.000000e+00> : vector<4x32xf32>
    %3 = tpu.matmul %1, %2, %cst {dimension_numbers = #tpu.dot_dimension_numbers<[1], [0], [0], [1], [0, 0, 1, 1], [], []>} : vector<4x12xf32>, vector<12x32xf32>, vector<4x32xf32> -> vector<4x32xf32>
    %c0_5 = arith.constant 0 : index
    %c0_6 = arith.constant 0 : index
    %4 = vector.load %arg6[%c0_5, %c0_6] : memref<4x32xf32, #tpu.memory_space<vmem>>, vector<4x32xf32>
    %cst_7 = arith.constant dense<0.000000e+00> : vector<4x32xf32>
    %5 = tpu.matmul %0, %4, %cst_7 {dimension_numbers = #tpu.dot_dimension_numbers<[1], [0], [0], [1], [0, 0, 1, 1], [], []>} : vector<4x4xf32>, vector<4x32xf32>, vector<4x32xf32> -> vector<4x32xf32>
    %6 = arith.addf %3, %5 : vector<4x32xf32>
    %c0_8 = arith.constant 0 : index
    %c0_9 = arith.constant 0 : index
    %7 = vector.load %arg7[%c0_8, %c0_9] : memref<1x32xf32, #tpu.memory_space<vmem>>, vector<1x32xf32>
    %8 = vector.broadcast %7 : vector<1x32xf32> to vector<4x32xf32>
    %9 = arith.addf %6, %8 : vector<4x32xf32>
    %cst_10 = arith.constant 0.000000e+00 : f32
    %10 = vector.broadcast %cst_10 : f32 to vector<4x32xf32>
    %11 = arith.maximumf %9, %10 : vector<4x32xf32>
    %c0_11 = arith.constant 0 : index
    %c0_12 = arith.constant 0 : index
    %12 = vector.load %arg8[%c0_11, %c0_12] : memref<32x8xf32, #tpu.memory_space<vmem>>, vector<32x8xf32>
    %cst_13 = arith.constant dense<0.000000e+00> : vector<4x8xf32>
    %13 = tpu.matmul %11, %12, %cst_13 {dimension_numbers = #tpu.dot_dimension_numbers<[1], [0], [0], [1], [0, 0, 1, 1], [], []>} : vector<4x32xf32>, vector<32x8xf32>, vector<4x8xf32> -> vector<4x8xf32>
    %c0_14 = arith.constant 0 : index
    %c0_15 = arith.constant 0 : index
    %14 = vector.load %arg9[%c0_14, %c0_15] : memref<1x8xf32, #tpu.memory_space<vmem>>, vector<1x8xf32>
    %15 = vector.broadcast %14 : vector<1x8xf32> to vector<4x8xf32>
    %16 = arith.addf %13, %15 : vector<4x8xf32>
    %c0_16 = arith.constant 0 : index
    %c0_17 = arith.constant 0 : index
    %17 = vector.load %arg2[%c0_16, %c0_17] : memref<4x12xf32, #tpu.memory_space<vmem>>, vector<4x12xf32>
    %c0_18 = arith.constant 0 : index
    %c0_19 = arith.constant 0 : index
    %18 = vector.load %arg5[%c0_18, %c0_19] : memref<12x32xf32, #tpu.memory_space<vmem>>, vector<12x32xf32>
    %cst_20 = arith.constant dense<0.000000e+00> : vector<4x32xf32>
    %19 = tpu.matmul %17, %18, %cst_20 {dimension_numbers = #tpu.dot_dimension_numbers<[1], [0], [0], [1], [0, 0, 1, 1], [], []>} : vector<4x12xf32>, vector<12x32xf32>, vector<4x32xf32> -> vector<4x32xf32>
    %c0_21 = arith.constant 0 : index
    %c0_22 = arith.constant 0 : index
    %20 = vector.load %arg6[%c0_21, %c0_22] : memref<4x32xf32, #tpu.memory_space<vmem>>, vector<4x32xf32>
    %cst_23 = arith.constant dense<0.000000e+00> : vector<4x32xf32>
    %21 = tpu.matmul %0, %20, %cst_23 {dimension_numbers = #tpu.dot_dimension_numbers<[1], [0], [0], [1], [0, 0, 1, 1], [], []>} : vector<4x4xf32>, vector<4x32xf32>, vector<4x32xf32> -> vector<4x32xf32>
    %22 = arith.addf %19, %21 : vector<4x32xf32>
    %c0_24 = arith.constant 0 : index
    %c0_25 = arith.constant 0 : index
    %23 = vector.load %arg7[%c0_24, %c0_25] : memref<1x32xf32, #tpu.memory_space<vmem>>, vector<1x32xf32>
    %24 = vector.broadcast %23 : vector<1x32xf32> to vector<4x32xf32>
    %25 = arith.addf %22, %24 : vector<4x32xf32>
    %cst_26 = arith.constant 0.000000e+00 : f32
    %26 = vector.broadcast %cst_26 : f32 to vector<4x32xf32>
    %27 = arith.maximumf %25, %26 : vector<4x32xf32>
    %c0_27 = arith.constant 0 : index
    %c0_28 = arith.constant 0 : index
    %28 = vector.load %arg8[%c0_27, %c0_28] : memref<32x8xf32, #tpu.memory_space<vmem>>, vector<32x8xf32>
    %cst_29 = arith.constant dense<0.000000e+00> : vector<4x8xf32>
    %29 = tpu.matmul %27, %28, %cst_29 {dimension_numbers = #tpu.dot_dimension_numbers<[1], [0], [0], [1], [0, 0, 1, 1], [], []>} : vector<4x32xf32>, vector<32x8xf32>, vector<4x8xf32> -> vector<4x8xf32>
    %c0_30 = arith.constant 0 : index
    %c0_31 = arith.constant 0 : index
    %30 = vector.load %arg9[%c0_30, %c0_31] : memref<1x8xf32, #tpu.memory_space<vmem>>, vector<1x8xf32>
    %31 = vector.broadcast %30 : vector<1x8xf32> to vector<4x8xf32>
    %32 = arith.addf %29, %31 : vector<4x8xf32>
    %c0_32 = arith.constant 0 : index
    %c0_33 = arith.constant 0 : index
    %33 = vector.load %arg4[%c0_32, %c0_33] : memref<4x1xi32, #tpu.memory_space<vmem>>, vector<4x1xi32>
    %34 = tpu.iota {dimensions = array<i32: 1>} : vector<4x8xi32>
    %35 = vector.broadcast %33 : vector<4x1xi32> to vector<4x8xi32>
    %36 = arith.cmpi eq, %34, %35 : vector<4x8xi32>
    %cst_34 = arith.constant 0.000000e+00 : f32
    %37 = vector.broadcast %cst_34 : f32 to vector<4x8xf32>
    %38 = arith.select %36, %16, %37 : vector<4x8xi1>, vector<4x8xf32>
    %cst_35 = arith.constant dense<0.000000e+00> : vector<4xf32>
    %39 = vector.multi_reduction <add>, %38, %cst_35 [1] : vector<4x8xf32> to vector<4xf32>
    %40 = vector.shape_cast %39 : vector<4xf32> to vector<4x1xf32>
    %cst_36 = arith.constant dense<0xFF800000> : vector<4xf32>
    %41 = vector.multi_reduction <maximumf>, %32, %cst_36 [1] : vector<4x8xf32> to vector<4xf32>
    %42 = vector.shape_cast %41 : vector<4xf32> to vector<4x1xf32>
    %43 = tpu.iota {dimensions = array<i32: 1>} : vector<4x2xi32>
    %c0_i32 = arith.constant 0 : i32
    %44 = vector.broadcast %c0_i32 : i32 to vector<4x2xi32>
    %45 = arith.cmpi eq, %43, %44 : vector<4x2xi32>
    %46 = vector.shape_cast %40 : vector<4x1xf32> to vector<4x1xf32>
    %47 = vector.broadcast %46 : vector<4x1xf32> to vector<4x2xf32>
    %48 = vector.shape_cast %42 : vector<4x1xf32> to vector<4x1xf32>
    %49 = vector.broadcast %48 : vector<4x1xf32> to vector<4x2xf32>
    %50 = arith.select %45, %47, %49 : vector<4x2xi1>, vector<4x2xf32>
    %c0_37 = arith.constant 0 : index
    %c0_38 = arith.constant 0 : index
    %51 = vector.load %arg10[%c0_37, %c0_38] : memref<4x2xf32, #tpu.memory_space<vmem>>, vector<4x2xf32>
    tpu.vector_store %arg10[%c0_37, %c0_38], %50 {strides = array<i32>} : memref<4x2xf32, #tpu.memory_space<vmem>>, vector<4x2xf32>,
    return
  }
  func.func @transform_0(%arg0: i32) -> (i32, i32) {
    %c0_i32 = arith.constant 0 : i32
    %c0_i32_0 = arith.constant 0 : i32
    return %arg0, %c0_i32 : i32, i32
  }
  func.func @transform_1(%arg0: i32) -> (i32, i32) {
    %c0_i32 = arith.constant 0 : i32
    %c0_i32_0 = arith.constant 0 : i32
    return %arg0, %c0_i32 : i32, i32
  }
  func.func @transform_2(%arg0: i32) -> (i32, i32) {
    %c0_i32 = arith.constant 0 : i32
    %c0_i32_0 = arith.constant 0 : i32
    return %arg0, %c0_i32 : i32, i32
  }
  func.func @transform_3(%arg0: i32) -> (i32, i32) {
    %c0_i32 = arith.constant 0 : i32
    %c0_i32_0 = arith.constant 0 : i32
    return %arg0, %c0_i32 : i32, i32
  }
  func.func @transform_4(%arg0: i32) -> (i32, i32) {
    %c0_i32 = arith.constant 0 : i32
    %c0_i32_0 = arith.constant 0 : i32
    %c0_i32_1 = arith.constant 0 : i32
    return %c0_i32, %c0_i32_0 : i32, i32
  }
  func.func @transform_5(%arg0: i32) -> (i32, i32) {
    %c0_i32 = arith.constant 0 : i32
    %c0_i32_0 = arith.constant 0 : i32
    %c0_i32_1 = arith.constant 0 : i32
    return %c0_i32, %c0_i32_0 : i32, i32
  }
  func.func @transform_6(%arg0: i32) -> (i32, i32) {
    %c0_i32 = arith.constant 0 : i32
    %c0_i32_0 = arith.constant 0 : i32
    %c0_i32_1 = arith.constant 0 : i32
    return %c0_i32, %c0_i32_0 : i32, i32
  }
  func.func @transform_7(%arg0: i32) -> (i32, i32) {
    %c0_i32 = arith.constant 0 : i32
    %c0_i32_0 = arith.constant 0 : i32
    %c0_i32_1 = arith.constant 0 : i32
    return %c0_i32, %c0_i32_0 : i32, i32
  }
  func.func @transform_8(%arg0: i32) -> (i32, i32) {
    %c0_i32 = arith.constant 0 : i32
    %c0_i32_0 = arith.constant 0 : i32
    %c0_i32_1 = arith.constant 0 : i32
    return %c0_i32, %c0_i32_0 : i32, i32
  }
  func.func @transform_9(%arg0: i32) -> (i32, i32) {
    %c0_i32 = arith.constant 0 : i32
    %c0_i32_0 = arith.constant 0 : i32
    return %arg0, %c0_i32 : i32, i32
  }
}

</mosaic_0001>

<llo_original>
// kernel: tpu_custom_call.1
$region0: #{tpu_custom_call.1}
  #allocation0 [shape = 'u32[]', space=smem, size = 0x4, offset = 0x4, fixed_abs, tag = 'smem constant byte address 0x4 - core index']
  #allocation1 [shape = 'u32[144,128]{1,0:T(1,128)}', space=vmem, size = 0x12000, scoped, tag = 'internal scratch']
  %s0 = inlined_call_operand.vmem [shape: f32[4,12], index: 0, kind: input, shape index: {}]
  %s1 = inlined_call_operand.vmem [shape: f32[4,12], index: 1, kind: input, shape index: {}]
  %s2 = inlined_call_operand.vmem [shape: f32[4,4], index: 2, kind: input, shape index: {}]
  %s3 = inlined_call_operand.vmem [shape: s32[4,1], index: 3, kind: input, shape index: {}]
  %s4 = inlined_call_operand.vmem [shape: f32[12,32], index: 4, kind: input, shape index: {}]
  %s5 = inlined_call_operand.vmem [shape: f32[4,32], index: 5, kind: input, shape index: {}]
  %s6 = inlined_call_operand.vmem [shape: f32[1,32], index: 6, kind: input, shape index: {}]
  %s7 = inlined_call_operand.vmem [shape: f32[32,8], index: 7, kind: input, shape index: {}]
  %s8 = inlined_call_operand.vmem [shape: f32[1,8], index: 8, kind: input, shape index: {}]
  %s9 = inlined_call_operand.vmem [shape: f32[4,2], index: 9, kind: output, shape index: {}]
  %s10 = sld [smem:[#allocation0]]
  $region46: #{tpu_custom_call.1} parent=0
    _
  %s12 = ssub.s32 1, %s10
  %s13 = scalar_select 0, %s12, %s10
  // Predicated region
  $region2: #{tpu_custom_call.1} parent=0 // pred_check
    _
  $region3: #{tpu_custom_call.1} parent=0 // pred_check_branch
    %15 = sbr.rel (0) target = $region5
  $region4: #{tpu_custom_call.1} parent=0 // pred_region
    _
  $region5: #{tpu_custom_call.1} parent=0 // pred_fallthru
    _
  // Predicated region
  $region6: #{tpu_custom_call.1} parent=0 // pred_check
    _
  $region7: #{tpu_custom_call.1} parent=0 // pred_check_branch
    %17 = sbr.rel (0) target = $region9
  $region8: #{tpu_custom_call.1} parent=0 // pred_region
    _
  $region9: #{tpu_custom_call.1} parent=0 // pred_fallthru
    _
  // Predicated region
  $region10: #{tpu_custom_call.1} parent=0 // pred_check
    _
  $region11: #{tpu_custom_call.1} parent=0 // pred_check_branch
    %19 = sbr.rel (0) target = $region13
  $region12: #{tpu_custom_call.1} parent=0 // pred_region
    _
  $region13: #{tpu_custom_call.1} parent=0 // pred_fallthru
    _
  // Predicated region
  $region14: #{tpu_custom_call.1} parent=0 // pred_check
    _
  $region15: #{tpu_custom_call.1} parent=0 // pred_check_branch
    %21 = sbr.rel (0) target = $region17
  $region16: #{tpu_custom_call.1} parent=0 // pred_region
    _
  $region17: #{tpu_custom_call.1} parent=0 // pred_fallthru
    _
  // Predicated region
  $region18: #{tpu_custom_call.1} parent=0 // pred_check
    _
  $region19: #{tpu_custom_call.1} parent=0 // pred_check_branch
    %23 = sbr.rel (0) target = $region21
  $region20: #{tpu_custom_call.1} parent=0 // pred_region
    _
  $region21: #{tpu_custom_call.1} parent=0 // pred_fallthru
    _
  // Predicated region
  $region22: #{tpu_custom_call.1} parent=0 // pred_check
    _
  $region23: #{tpu_custom_call.1} parent=0 // pred_check_branch
    %25 = sbr.rel (0) target = $region25
  $region24: #{tpu_custom_call.1} parent=0 // pred_region
    _
  $region25: #{tpu_custom_call.1} parent=0 // pred_fallthru
    _
  // Predicated region
  $region26: #{tpu_custom_call.1} parent=0 // pred_check
    _
  $region27: #{tpu_custom_call.1} parent=0 // pred_check_branch
    %27 = sbr.rel (0) target = $region29
  $region28: #{tpu_custom_call.1} parent=0 // pred_region
    _
  $region29: #{tpu_custom_call.1} parent=0 // pred_fallthru
    _
  // Predicated region
  $region30: #{tpu_custom_call.1} parent=0 // pred_check
    _
  $region31: #{tpu_custom_call.1} parent=0 // pred_check_branch
    %29 = sbr.rel (0) target = $region33
  $region32: #{tpu_custom_call.1} parent=0 // pred_region
    _
  $region33: #{tpu_custom_call.1} parent=0 // pred_fallthru
    _
  // Predicated region
  $region34: #{tpu_custom_call.1} parent=0 // pred_check
    _
  $region35: #{tpu_custom_call.1} parent=0 // pred_check_branch
    %31 = sbr.rel (0) target = $region37
  $region36: #{tpu_custom_call.1} parent=0 // pred_region
    _
  $region37: #{tpu_custom_call.1} parent=0 // pred_fallthru
    _
  %v32 = vld [vmem:[%s2] sm:$0xf]
  %v33 = vld [vmem:[%s0] sm:$0xf]
  %v34 = vld [vmem:[%s4] sm:$0xff]
  %v35 = vld [vmem:[%s4 + $0x8] sm:$0xf]
  %v36 = vld [vmem:[%s5] sm:$0xf]
  %vm37 = vcmask 31744
  %v39 = vsel %vm37, %v32, 0
  %vm41 = vcmask 1043456
  %v43 = vsel %vm41, %v36, 0
  %45 = vmatprep.subr.mxu0 0.0
  %46 = vmatpush1.msra.mxu0 %v43
  %47 = vmatprep.subr.mxu0 0.0
  %48 = vmatpush1.msra.mxu0 0.0
  %49 = vmatprep.subr.mxu0 0.0
  %50 = vmatpush1.msra.mxu0 0.0
  %51 = vmatprep.subr.mxu0 0.0
  %52 = vmatpush1.msra.mxu0 0.0
  %53 = vmatprep.subr.mxu0 0.0
  %54 = vmatpush1.msra.mxu0 0.0
  %55 = vmatprep.subr.mxu0 0.0
  %56 = vmatpush1.msra.mxu0 0.0
  %57 = vmatprep.subr.mxu0 0.0
  %58 = vmatpush1.msra.mxu0 0.0
  %59 = vmatprep.subr.mxu0 0.0
  %60 = vmatpush1.msra.mxu0 0.0
  %61 = vmatprep.subr.mxu0 0.0
  %62 = vmatpush1.msra.mxu0 0.0
  %63 = vmatprep.subr.mxu0 0.0
  %64 = vmatpush1.msra.mxu0 0.0
  %65 = vmatprep.subr.mxu0 0.0
  %66 = vmatpush1.msra.mxu0 0.0
  %67 = vmatprep.subr.mxu0 0.0
  %68 = vmatpush1.msra.mxu0 0.0
  %69 = vmatprep.subr.mxu0 0.0
  %70 = vmatpush1.msra.mxu0 0.0
  %71 = vmatprep.subr.mxu0 0.0
  %72 = vmatpush1.msra.mxu0 0.0
  %73 = vmatprep.subr.mxu0 0.0
  %74 = vmatpush1.msra.mxu0 0.0
  %75 = vmatprep.subr.mxu0 0.0
  %76 = vmatpush1.msra.mxu0 0.0
  %77 = vmatprep.subr.mxu0 0.0
  %78 = vmatpush1.msra.mxu0 0.0
  %79 = vmatprep.subr.mxu0 0.0
  %80 = vmatpush1.msra.mxu0 0.0
  %81 = vmatprep.subr.mxu0 0.0
  %82 = vmatpush1.msra.mxu0 0.0
  %83 = vmatprep.subr.mxu0 0.0
  %84 = vmatpush1.msra.mxu0 0.0
  %85 = vmatprep.subr.mxu0 0.0
  %86 = vmatpush1.msra.mxu0 0.0
  %87 = vmatprep.subr.mxu0 0.0
  %88 = vmatpush1.msra.mxu0 0.0
  %89 = vmatprep.subr.mxu0 0.0
  %90 = vmatpush1.msra.mxu0 0.0
  %91 = vmatprep.subr.mxu0 0.0
  %92 = vmatpush1.msra.mxu0 0.0
  %93 = vmatprep.subr.mxu0 0.0
  %94 = vmatpush1.msra.mxu0 0.0
  %95 = vmatprep.subr.mxu0 0.0
  %96 = vmatpush1.msra.mxu0 0.0
  %97 = vmatprep.subr.mxu0 0.0
  %98 = vmatpush1.msra.mxu0 0.0
  %99 = vmatprep.subr.mxu0 0.0
  %100 = vmatpush1.msra.mxu0 0.0
  %101 = vmatprep.subr.mxu0 0.0
  %102 = vmatpush1.msra.mxu0 0.0
  %103 = vmatprep.subr.mxu0 0.0
  %104 = vmatpush1.msra.mxu0 0.0
  %105 = vmatprep.subr.mxu0 0.0
  %106 = vmatpush1.msra.mxu0 0.0
  %107 = vmatprep.subr.mxu0 0.0
  %108 = vmatpush1.msra.mxu0 0.0
  %109 = vmatprep.mubr.f32.mxu0 0.0
  %110 = vmatmul.mubr.f32.gmra.mrb[0].mxu0 %v39
  %v111 = vpop.f32.mrb[0].mxu0
  %v112 = vadd.f32 0.0, %v111
  %v113 = vpop.f32.mrb[0].mxu0
  %114 = vdwg.mxu0
  %vm115 = vcmask 97280
  %v117 = vsel %vm115, %v33, 0
  %v120 = vsel %vm41, %v35, 0
  %122 = vmatprep.subr.mxu0 0.0
  %123 = vmatpush1.msra.mxu0 %v34
  %124 = vmatprep.subr.mxu0 0.0
  %125 = vmatpush1.msra.mxu0 %v120
  %126 = vmatprep.subr.mxu0 0.0
  %127 = vmatpush1.msra.mxu0 0.0
  %128 = vmatprep.subr.mxu0 0.0
  %129 = vmatpush1.msra.mxu0 0.0
  %130 = vmatprep.subr.mxu0 0.0
  %131 = vmatpush1.msra.mxu0 0.0
  %132 = vmatprep.subr.mxu0 0.0
  %133 = vmatpush1.msra.mxu0 0.0
  %134 = vmatprep.subr.mxu0 0.0
  %135 = vmatpush1.msra.mxu0 0.0
  %136 = vmatprep.subr.mxu0 0.0
  %137 = vmatpush1.msra.mxu0 0.0
  %138 = vmatprep.subr.mxu0 0.0
  %139 = vmatpush1.msra.mxu0 0.0
  %140 = vmatprep.subr.mxu0 0.0
  %141 = vmatpush1.msra.mxu0 0.0
  %142 = vmatprep.subr.mxu0 0.0
  %143 = vmatpush1.msra.mxu0 0.0
  %144 = vmatprep.subr.mxu0 0.0
  %145 = vmatpush1.msra.mxu0 0.0
  %146 = vmatprep.subr.mxu0 0.0
  %147 = vmatpush1.msra.mxu0 0.0
  %148 = vmatprep.subr.mxu0 0.0
  %149 = vmatpush1.msra.mxu0 0.0
  %150 = vmatprep.subr.mxu0 0.0
  %151 = vmatpush1.msra.mxu0 0.0
  %152 = vmatprep.subr.mxu0 0.0
  %153 = vmatpush1.msra.mxu0 0.0
  %154 = vmatprep.subr.mxu0 0.0
  %155 = vmatpush1.msra.mxu0 0.0
  %156 = vmatprep.subr.mxu0 0.0
  %157 = vmatpush1.msra.mxu0 0.0
  %158 = vmatprep.subr.mxu0 0.0
  %159 = vmatpush1.msra.mxu0 0.0
  %160 = vmatprep.subr.mxu0 0.0
  %161 = vmatpush1.msra.mxu0 0.0
  %162 = vmatprep.subr.mxu0 0.0
  %163 = vmatpush1.msra.mxu0 0.0
  %164 = vmatprep.subr.mxu0 0.0
  %165 = vmatpush1.msra.mxu0 0.0
  %166 = vmatprep.subr.mxu0 0.0
  %167 = vmatpush1.msra.mxu0 0.0
  %168 = vmatprep.subr.mxu0 0.0
  %169 = vmatpush1.msra.mxu0 0.0
  %170 = vmatprep.subr.mxu0 0.0
  %171 = vmatpush1.msra.mxu0 0.0
  %172 = vmatprep.subr.mxu0 0.0
  %173 = vmatpush1.msra.mxu0 0.0
  %174 = vmatprep.subr.mxu0 0.0
  %175 = vmatpush1.msra.mxu0 0.0
  %176 = vmatprep.subr.mxu0 0.0
  %177 = vmatpush1.msra.mxu0 0.0
  %178 = vmatprep.subr.mxu0 0.0
  %179 = vmatpush1.msra.mxu0 0.0
  %180 = vmatprep.subr.mxu0 0.0
  %181 = vmatpush1.msra.mxu0 0.0
  %182 = vmatprep.subr.mxu0 0.0
  %183 = vmatpush1.msra.mxu0 0.0
  %184 = vmatprep.subr.mxu0 0.0
  %185 = vmatpush1.msra.mxu0 0.0
  %186 = vmatprep.mubr.f32.mxu0 0.0
  %187 = vmatmul.mubr.f32.gmra.mrb[0].mxu0 %v117
  %v188 = vpop.f32.mrb[0].mxu0
  %v189 = vadd.f32 %v112, %v188
  %v190 = vpop.f32.mrb[0].mxu0
  %191 = vdwg.mxu0
  %v192 = vld [vmem:[%s6] sm:$0x1]
  %v194 = vlaneseq
  %v195 = vshrl.u32 %v194, 7
  %v196 = vsub.s32 0, %v195
  %v197 = vrot.slane %v192, %v196
  %v199 = vadd.f32 %v189, %v197
  %v200 = vmax.f32 %v199, 0.0
  %v201 = vld [vmem:[%s7] sm:$0xff]
  %v202 = vld [vmem:[%s7 + $0x8] sm:$0xff]
  %v203 = vld [vmem:[%s7 + $0x10] sm:$0xff]
  %v204 = vld [vmem:[%s7 + $0x18] sm:$0xff]
  %v205 = vld [vmem:[%s8] sm:$0x1]
  %v207 = vlaneseq
  %v208 = vshrl.u32 %v207, 7
  %v209 = vsub.s32 0, %v208
  %v210 = vrot.slane %v205, %v209
  %vm212 = vcmask 261120
  %v214 = vsel %vm212, %v200, 0
  %216 = vmatprep.subr.mxu0 0.0
  %217 = vmatpush1.msra.mxu0 %v201
  %218 = vmatprep.subr.mxu0 0.0
  %219 = vmatpush1.msra.mxu0 %v202
  %220 = vmatprep.subr.mxu0 0.0
  %221 = vmatpush1.msra.mxu0 %v203
  %222 = vmatprep.subr.mxu0 0.0
  %223 = vmatpush1.msra.mxu0 %v204
  %224 = vmatprep.subr.mxu0 0.0
  %225 = vmatpush1.msra.mxu0 0.0
  %226 = vmatprep.subr.mxu0 0.0
  %227 = vmatpush1.msra.mxu0 0.0
  %228 = vmatprep.subr.mxu0 0.0
  %229 = vmatpush1.msra.mxu0 0.0
  %230 = vmatprep.subr.mxu0 0.0
  %231 = vmatpush1.msra.mxu0 0.0
  %232 = vmatprep.subr.mxu0 0.0
  %233 = vmatpush1.msra.mxu0 0.0
  %234 = vmatprep.subr.mxu0 0.0
  %235 = vmatpush1.msra.mxu0 0.0
  %236 = vmatprep.subr.mxu0 0.0
  %237 = vmatpush1.msra.mxu0 0.0
  %238 = vmatprep.subr.mxu0 0.0
  %239 = vmatpush1.msra.mxu0 0.0
  %240 = vmatprep.subr.mxu0 0.0
  %241 = vmatpush1.msra.mxu0 0.0
  %242 = vmatprep.subr.mxu0 0.0
  %243 = vmatpush1.msra.mxu0 0.0
  %244 = vmatprep.subr.mxu0 0.0
  %245 = vmatpush1.msra.mxu0 0.0
  %246 = vmatprep.subr.mxu0 0.0
  %247 = vmatpush1.msra.mxu0 0.0
  %248 = vmatprep.subr.mxu0 0.0
  %249 = vmatpush1.msra.mxu0 0.0
  %250 = vmatprep.subr.mxu0 0.0
  %251 = vmatpush1.msra.mxu0 0.0
  %252 = vmatprep.subr.mxu0 0.0
  %253 = vmatpush1.msra.mxu0 0.0
  %254 = vmatprep.subr.mxu0 0.0
  %255 = vmatpush1.msra.mxu0 0.0
  %256 = vmatprep.subr.mxu0 0.0
  %257 = vmatpush1.msra.mxu0 0.0
  %258 = vmatprep.subr.mxu0 0.0
  %259 = vmatpush1.msra.mxu0 0.0
  %260 = vmatprep.subr.mxu0 0.0
  %261 = vmatpush1.msra.mxu0 0.0
  %262 = vmatprep.subr.mxu0 0.0
  %263 = vmatpush1.msra.mxu0 0.0
  %264 = vmatprep.subr.mxu0 0.0
  %265 = vmatpush1.msra.mxu0 0.0
  %266 = vmatprep.subr.mxu0 0.0
  %267 = vmatpush1.msra.mxu0 0.0
  %268 = vmatprep.subr.mxu0 0.0
  %269 = vmatpush1.msra.mxu0 0.0
  %270 = vmatprep.subr.mxu0 0.0
  %271 = vmatpush1.msra.mxu0 0.0
  %272 = vmatprep.subr.mxu0 0.0
  %273 = vmatpush1.msra.mxu0 0.0
  %274 = vmatprep.subr.mxu0 0.0
  %275 = vmatpush1.msra.mxu0 0.0
  %276 = vmatprep.subr.mxu0 0.0
  %277 = vmatpush1.msra.mxu0 0.0
  %278 = vmatprep.subr.mxu0 0.0
  %279 = vmatpush1.msra.mxu0 0.0
  %280 = vmatprep.mubr.f32.mxu0 0.0
  %281 = vmatmul.mubr.f32.gmra.mrb[0].mxu0 %v214
  %v282 = vpop.f32.mrb[0].mxu0
  %v283 = vadd.f32 %v210, %v282
  %v284 = vpop.f32.mrb[0].mxu0
  %285 = vdwg.mxu0
  %v286 = vld [vmem:[%s1] sm:$0xf]
  %v288 = vsel %vm115, %v286, 0
  %290 = vmatprep.subr.mxu0 0.0
  %291 = vmatpush1.msra.mxu0 %v34
  %292 = vmatprep.subr.mxu0 0.0
  %293 = vmatpush1.msra.mxu0 %v120
  %294 = vmatprep.subr.mxu0 0.0
  %295 = vmatpush1.msra.mxu0 0.0
  %296 = vmatprep.subr.mxu0 0.0
  %297 = vmatpush1.msra.mxu0 0.0
  %298 = vmatprep.subr.mxu0 0.0
  %299 = vmatpush1.msra.mxu0 0.0
  %300 = vmatprep.subr.mxu0 0.0
  %301 = vmatpush1.msra.mxu0 0.0
  %302 = vmatprep.subr.mxu0 0.0
  %303 = vmatpush1.msra.mxu0 0.0
  %304 = vmatprep.subr.mxu0 0.0
  %305 = vmatpush1.msra.mxu0 0.0
  %306 = vmatprep.subr.mxu0 0.0
  %307 = vmatpush1.msra.mxu0 0.0
  %308 = vmatprep.subr.mxu0 0.0
  %309 = vmatpush1.msra.mxu0 0.0
  %310 = vmatprep.subr.mxu0 0.0
  %311 = vmatpush1.msra.mxu0 0.0
  %312 = vmatprep.subr.mxu0 0.0
  %313 = vmatpush1.msra.mxu0 0.0
  %314 = vmatprep.subr.mxu0 0.0
  %315 = vmatpush1.msra.mxu0 0.0
  %316 = vmatprep.subr.mxu0 0.0
  %317 = vmatpush1.msra.mxu0 0.0
  %318 = vmatprep.subr.mxu0 0.0
  %319 = vmatpush1.msra.mxu0 0.0
  %320 = vmatprep.subr.mxu0 0.0
  %321 = vmatpush1.msra.mxu0 0.0
  %322 = vmatprep.subr.mxu0 0.0
  %323 = vmatpush1.msra.mxu0 0.0
  %324 = vmatprep.subr.mxu0 0.0
  %325 = vmatpush1.msra.mxu0 0.0
  %326 = vmatprep.subr.mxu0 0.0
  %327 = vmatpush1.msra.mxu0 0.0
  %328 = vmatprep.subr.mxu0 0.0
  %329 = vmatpush1.msra.mxu0 0.0
  %330 = vmatprep.subr.mxu0 0.0
  %331 = vmatpush1.msra.mxu0 0.0
  %332 = vmatprep.subr.mxu0 0.0
  %333 = vmatpush1.msra.mxu0 0.0
  %334 = vmatprep.subr.mxu0 0.0
  %335 = vmatpush1.msra.mxu0 0.0
  %336 = vmatprep.subr.mxu0 0.0
  %337 = vmatpush1.msra.mxu0 0.0
  %338 = vmatprep.subr.mxu0 0.0
  %339 = vmatpush1.msra.mxu0 0.0
  %340 = vmatprep.subr.mxu0 0.0
  %341 = vmatpush1.msra.mxu0 0.0
  %342 = vmatprep.subr.mxu0 0.0
  %343 = vmatpush1.msra.mxu0 0.0
  %344 = vmatprep.subr.mxu0 0.0
  %345 = vmatpush1.msra.mxu0 0.0
  %346 = vmatprep.subr.mxu0 0.0
  %347 = vmatpush1.msra.mxu0 0.0
  %348 = vmatprep.subr.mxu0 0.0
  %349 = vmatpush1.msra.mxu0 0.0
  %350 = vmatprep.subr.mxu0 0.0
  %351 = vmatpush1.msra.mxu0 0.0
  %352 = vmatprep.subr.mxu0 0.0
  %353 = vmatpush1.msra.mxu0 0.0
  %354 = vmatprep.mubr.f32.mxu0 0.0
  %355 = vmatmul.mubr.f32.gmra.mrb[0].mxu0 %v288
  %v356 = vpop.f32.mrb[0].mxu0
  %v357 = vadd.f32 %v112, %v356
  %v358 = vpop.f32.mrb[0].mxu0
  %359 = vdwg.mxu0
  %v360 = vadd.f32 %v357, %v197
  %v361 = vmax.f32 %v360, 0.0
  %v363 = vsel %vm212, %v361, 0
  %365 = vmatprep.subr.mxu0 0.0
  %366 = vmatpush1.msra.mxu0 %v201
  %367 = vmatprep.subr.mxu0 0.0
  %368 = vmatpush1.msra.mxu0 %v202
  %369 = vmatprep.subr.mxu0 0.0
  %370 = vmatpush1.msra.mxu0 %v203
  %371 = vmatprep.subr.mxu0 0.0
  %372 = vmatpush1.msra.mxu0 %v204
  %373 = vmatprep.subr.mxu0 0.0
  %374 = vmatpush1.msra.mxu0 0.0
  %375 = vmatprep.subr.mxu0 0.0
  %376 = vmatpush1.msra.mxu0 0.0
  %377 = vmatprep.subr.mxu0 0.0
  %378 = vmatpush1.msra.mxu0 0.0
  %379 = vmatprep.subr.mxu0 0.0
  %380 = vmatpush1.msra.mxu0 0.0
  %381 = vmatprep.subr.mxu0 0.0
  %382 = vmatpush1.msra.mxu0 0.0
  %383 = vmatprep.subr.mxu0 0.0
  %384 = vmatpush1.msra.mxu0 0.0
  %385 = vmatprep.subr.mxu0 0.0
  %386 = vmatpush1.msra.mxu0 0.0
  %387 = vmatprep.subr.mxu0 0.0
  %388 = vmatpush1.msra.mxu0 0.0
  %389 = vmatprep.subr.mxu0 0.0
  %390 = vmatpush1.msra.mxu0 0.0
  %391 = vmatprep.subr.mxu0 0.0
  %392 = vmatpush1.msra.mxu0 0.0
  %393 = vmatprep.subr.mxu0 0.0
  %394 = vmatpush1.msra.mxu0 0.0
  %395 = vmatprep.subr.mxu0 0.0
  %396 = vmatpush1.msra.mxu0 0.0
  %397 = vmatprep.subr.mxu0 0.0
  %398 = vmatpush1.msra.mxu0 0.0
  %399 = vmatprep.subr.mxu0 0.0
  %400 = vmatpush1.msra.mxu0 0.0
  %401 = vmatprep.subr.mxu0 0.0
  %402 = vmatpush1.msra.mxu0 0.0
  %403 = vmatprep.subr.mxu0 0.0
  %404 = vmatpush1.msra.mxu0 0.0
  %405 = vmatprep.subr.mxu0 0.0
  %406 = vmatpush1.msra.mxu0 0.0
  %407 = vmatprep.subr.mxu0 0.0
  %408 = vmatpush1.msra.mxu0 0.0
  %409 = vmatprep.subr.mxu0 0.0
  %410 = vmatpush1.msra.mxu0 0.0
  %411 = vmatprep.subr.mxu0 0.0
  %412 = vmatpush1.msra.mxu0 0.0
  %413 = vmatprep.subr.mxu0 0.0
  %414 = vmatpush1.msra.mxu0 0.0
  %415 = vmatprep.subr.mxu0 0.0
  %416 = vmatpush1.msra.mxu0 0.0
  %417 = vmatprep.subr.mxu0 0.0
  %418 = vmatpush1.msra.mxu0 0.0
  %419 = vmatprep.subr.mxu0 0.0
  %420 = vmatpush1.msra.mxu0 0.0
  %421 = vmatprep.subr.mxu0 0.0
  %422 = vmatpush1.msra.mxu0 0.0
  %423 = vmatprep.subr.mxu0 0.0
  %424 = vmatpush1.msra.mxu0 0.0
  %425 = vmatprep.subr.mxu0 0.0
  %426 = vmatpush1.msra.mxu0 0.0
  %427 = vmatprep.subr.mxu0 0.0
  %428 = vmatpush1.msra.mxu0 0.0
  %429 = vmatprep.mubr.f32.mxu0 0.0
  %430 = vmatmul.mubr.f32.gmra.mrb[0].mxu0 %v363
  %v431 = vpop.f32.mrb[0].mxu0
  %v432 = vadd.f32 %v210, %v431
  %v433 = vpop.f32.mrb[0].mxu0
  %434 = vdwg.mxu0
  %v435 = vld [vmem:[%s3] sm:$0xf]
  %v436 = vlaneseq
  %v437 = vand.u32 %v436, 127
  %438 = vset.pattern.permute.xlu0 0
  %439 = vperm.xlu0 %438, %v435
  %v440 = vpop.permute.xlu0 %439
  %vm441 = vcmp.eq.s32.totalorder %v437, %v440
  %v442 = vsel %vm441, %v283, 0.0
  %vm443 = vcmask 60416
  %v444 = vsel %vm443, %v442, 0.0
  %445 = vadd.xlane.f32.xlu0 %v444
  %v446 = vpop.xlane.xlu0 %445
  %v447 = vsel %vm443, %v432, -inf
  %448 = vmax.xlane.f32.xlu0 %v447
  %v449 = vpop.xlane.xlu0 %448
  %vm450 = vcmp.eq.s32.totalorder %v437, 0
  %v451 = vsel %vm450, %v446, %v449
  %vm452 = vcmask 11264
  %453 = vst.msk [vmem:[%s9] sm:$0xf] %vm452, %v451
  // Predicated region
  $region38: #{tpu_custom_call.1} parent=0 // pred_check
    _
  $region39: #{tpu_custom_call.1} parent=0 // pred_check_branch
    %455 = sbr.rel (0) target = $region41
  $region40: #{tpu_custom_call.1} parent=0 // pred_region
    _
  $region41: #{tpu_custom_call.1} parent=0 // pred_fallthru
    _
  // Predicated region
  $region42: #{tpu_custom_call.1} parent=0 // pred_check
    _
  $region43: #{tpu_custom_call.1} parent=0 // pred_check_branch
    %457 = sbr.rel (0) target = $region45
  $region44: #{tpu_custom_call.1} parent=0 // pred_region
    _
  $region45: #{tpu_custom_call.1} parent=0 // pred_fallthru
    _

</llo_original>
